<compile_context>
chip_gen: v5e
topology: v5e:2x2
jax: 0.10.0
libtpu: 0.0.40
codegen_flags: <defaults>
</compile_context>

<pallas_src>
import functools

import numpy as np

import jax
import jax.numpy as jnp
from jax.experimental import pallas as pl
from jax.experimental.pallas import tpu as pltpu


def _expand_ln_kernel(x_ref, w_ref, ws_ref, s_ref, r_ref, g_ref, b_ref, o_ref,
                      *, inv_c, eps):
    # x_ref : (TM, C)        input rows for TH whole h-rows (TM = TH * W)
    # w_ref : (1, C, C)      weight slab for this p1 (in x out, out = (p2, c))
    # ws_ref: (1, C, ds)     w_slab @ S  -> folds the group mean into the x matmul
    # s_ref : (C, ds)        0/1 group-sum indicator
    # r_ref : (ds, C)        S.T (group -> lane broadcast)
    # g_ref, b_ref: (1, C)   LayerNorm affine, pre-tiled over the p2 groups
    # o_ref : (TH, W*C)      lane-dense output block for this p1 slab
    th, wc = o_ref.shape
    tm, c = x_ref.shape
    w_sp = wc // c

    x = x_ref[...]
    y = jnp.dot(x, w_ref[0], preferred_element_type=jnp.float32)            # (TM, C)

    # Group mean folded into the input matmul (independent of y's MRF drain).
    mean_g = jnp.dot(x, ws_ref[0], preferred_element_type=jnp.float32) * inv_c   # (TM, ds)
    # E[y^2] per group via a 0/1 indicator matmul (no lane-splitting reshape).
    msq_g = jnp.dot(y * y, s_ref[...], preferred_element_type=jnp.float32) * inv_c
    rstd_g = jax.lax.rsqrt(msq_g - mean_g * mean_g + eps)                    # (TM, ds) EUP

    # Broadcast group stats back to lanes with tiny (ds, C) 0/1 matmuls.
    mean = jnp.dot(mean_g, r_ref[...], preferred_element_type=jnp.float32)   # (TM, C)
    rstd = jnp.dot(rstd_g, r_ref[...], preferred_element_type=jnp.float32)   # (TM, C)

    out = ((y - mean) * rstd * g_ref[...] + b_ref[...]).astype(o_ref.dtype)  # (TM, C)

    # Single sublane->lane merge (TH*W, C) -> (TH, W*C): leading-dim split
    # (layout-free since W % 8 == 0), static middle-dim slices, lane concat,
    # then ONE dense store into the lane-dense output block.
    out3 = out.reshape(th, w_sp, c)
    o_ref[...] = jnp.concatenate([out3[:, i, :] for i in range(w_sp)], axis=1)


def _choose_tile_h(BH, W, C, in_itemsize, out_itemsize, vmem_budget):
    """Pick TH (h-rows per block): divides BH, output-block sublane dim TH is a
    multiple of 8 (or the full array), real (lane-padded + f32 intermediates)
    footprint fits the budget, and the row-axis grid is even and >=2 steps when
    possible so both v7x TensorCores get work."""
    lane = 128
    cpad = ((C + lane - 1) // lane) * lane
    wcpad = ((W * C + lane - 1) // lane) * lane

    def footprint(th):
        tm = th * W
        blocks = 2 * tm * cpad * in_itemsize + 2 * th * wcpad * out_itemsize  # dbl-buffered I/O
        scratch = 6 * tm * cpad * 4                       # y, y*y, mean, rstd, out, merged (f32)
        weights = 4 * (2 * C * cpad + C * lane + 2 * lane * cpad + 2 * cpad)  # slabs/S/R/affine
        return blocks + scratch + weights

    cands = [d for d in range(1, BH + 1)
             if BH % d == 0 and (d % 8 == 0 or d == BH)]
    fitting = [d for d in cands if footprint(d) <= vmem_budget]
    if not fitting:
        th = min(cands)                                   # smallest legal tile
        return th, footprint(th)

    target_rows = 1024                                    # near-roofline tile, v7x-friendly
    for ok in (
        lambda d: (BH // d) >= 2 and (BH // d) % 2 == 0 and d * W <= target_rows,
        lambda d: (BH // d) >= 2 and d * W <= target_rows,
        lambda d: d * W <= target_rows,
    ):
        sel = [d for d in fitting if ok(d)]
        if sel:
            th = max(sel)
            return th, footprint(th)
    th = min(fitting)
    return th, footprint(th)


def _reference(x, w_expand, gamma, beta, dim_scale=4, eps=1e-5):
    B, H, W, C = x.shape
    c_out = C // dim_scale
    y = jnp.einsum('bhwc,oc->bhwo', x, w_expand)
    y = y.reshape(B, H, W, dim_scale, dim_scale, c_out)
    y = y.transpose(0, 1, 3, 2, 4, 5).reshape(B, H * dim_scale, W * dim_scale, c_out)
    mean = jnp.mean(y, axis=-1, keepdims=True)
    var = jnp.mean((y - mean) ** 2, axis=-1, keepdims=True)
    return (y - mean) * jax.lax.rsqrt(var + eps) * gamma + beta


def final_patch_expand2d(x, w_expand, gamma, beta, *, dim_scale=4, eps=1e-5):
    """x: (B, H, W, C); w_expand: (dim_scale*C, C) PyTorch Linear weight (out, in);
    gamma, beta: (C // dim_scale,). Returns (B, H*ds, W*ds, C // ds)."""
    B, H, W, C = x.shape
    ds = dim_scale
    assert C % ds == 0, "dim must be divisible by dim_scale"
    c_out = C // ds
    Dout = ds * C
    BH = B * H
    M = BH * W

    if (W % 8 != 0) or ((W * C) % 128 != 0):
        # TODO(synk): misaligned W / W*C (sublane/lane padded layouts) fall back
        # to plain XLA instead of a bespoke padded-kernel path.
        return _reference(x, w_expand, gamma, beta, dim_scale=ds, eps=eps)

    in_dt = x.dtype
    itemsize = jnp.dtype(in_dt).itemsize

    xf = x.reshape(M, C)

    # Per-p1 weight slabs: slab p1 = W_expand[p1*C:(p1+1)*C, :].T  -> (C_in, C_out_slab),
    # output columns ordered (p2, c).
    w3 = jnp.transpose(w_expand.reshape(ds, C, C), (0, 2, 1)).astype(in_dt)     # (ds, C, C)

    # 0/1 group indicators (numpy -> constant-folded).
    grp = np.arange(C, dtype=np.int32) // c_out
    S = (grp[:, None] == np.arange(ds, dtype=np.int32)[None, :]).astype(np.float32)   # (C, ds)
    R = np.ascontiguousarray(S.T)                                                     # (ds, C)

    # Group-sum columns folded into the input matmul: ws3[p1] = w_slab[p1] @ S.
    ws3 = (w3.astype(jnp.float32) @ jnp.asarray(S)).astype(in_dt)                # (ds, C, ds)

    # LayerNorm affine, pre-tiled to the slab's (p2, c) lane order.
    g_t = jnp.tile(gamma.astype(jnp.float32), ds).reshape(1, C)
    b_t = jnp.tile(beta.astype(jnp.float32), ds).reshape(1, C)

    try:
        vmem_cap = int(pltpu.get_tpu_info().vmem_capacity_bytes)
    except Exception:
        vmem_cap = 64 << 20                 # safe lower bound (v7x physical VMEM)

    TH, needed = _choose_tile_h(BH, W, C, itemsize, itemsize,
                                vmem_budget=min(24 << 20, vmem_cap // 2))
    TM = TH * W
    grid = (BH // TH, ds)
    vmem_limit = int(min(vmem_cap, max(32 << 20, int(needed * 1.5))))

    G = ds * ds
    flops = 2 * M * C * Dout + 8 * M * C * G + 7 * M * Dout
    bytes_accessed = itemsize * M * (C + Dout) + 4 * (2 * C * Dout + 2 * C * G + 2 * C)
    cost = pl.CostEstimate(flops=int(flops), transcendentals=int(M * G),
                           bytes_accessed=int(bytes_accessed))

    kernel = functools.partial(_expand_ln_kernel, inv_c=1.0 / c_out, eps=eps)

    y = pl.pallas_call(
        kernel,
        out_shape=jax.ShapeDtypeStruct((BH, ds * W * C), in_dt),
        grid_spec=pltpu.PrefetchScalarGridSpec(
            num_scalar_prefetch=0,
            grid=grid,
            in_specs=[
                pl.BlockSpec((TM, C), lambda i, p: (i, 0)),        # x rows (resident across p)
                pl.BlockSpec((1, C, C), lambda i, p: (p, 0, 0)),   # weight slab p1
                pl.BlockSpec((1, C, ds), lambda i, p: (p, 0, 0)),  # slab @ S (mean fold)
                pl.BlockSpec((C, ds), lambda i, p: (0, 0)),        # S (resident)
                pl.BlockSpec((ds, C), lambda i, p: (0, 0)),        # R = S.T (resident)
                pl.BlockSpec((1, C), lambda i, p: (0, 0)),         # gamma (tiled)
                pl.BlockSpec((1, C), lambda i, p: (0, 0)),         # beta (tiled)
            ],
            out_specs=pl.BlockSpec((TH, W * C), lambda i, p: (i, p)),
        ),
        compiler_params=pltpu.CompilerParams(
            dimension_semantics=("parallel", "parallel"),
            vmem_limit_bytes=vmem_limit),
        cost_estimate=cost,
    )(xf, w3, ws3, jnp.asarray(S), jnp.asarray(R), g_t, b_t)

    # Contiguous (free) reshape: (B*H, ds*W*C) flat order == (b, h, p1, w, p2, c).
    return y.reshape(B, H * ds, W * ds, c_out)


if __name__ == "__main__":
    # Small shapes consistent with the module: dim=32, dim_scale=4.
    B, H, W, dim = 2, 8, 8, 32
    dim_scale = 4
    c_out = dim // dim_scale

    key = jax.random.PRNGKey(0)
    kx, kw, kg, kb = jax.random.split(key, 4)
    x = jax.random.normal(kx, (B, H, W, dim), dtype=jnp.float32)
    # nn.Linear(dim, dim_scale*dim, bias=False) weight: (out_features, in_features)
    w_expand = (jax.random.normal(kw, (dim_scale * dim, dim), dtype=jnp.float32)
                * (1.0 / jnp.sqrt(dim)))
    # Non-trivial LayerNorm affine to exercise gamma/beta handling.
    gamma = 1.0 + 0.1 * jax.random.normal(kg, (c_out,), dtype=jnp.float32)
    beta = 0.1 * jax.random.normal(kb, (c_out,), dtype=jnp.float32)

    out = final_patch_expand2d(x, w_expand, gamma, beta, dim_scale=dim_scale)
    out = jax.block_until_ready(out)

    ref = _reference(x, w_expand, gamma, beta, dim_scale=dim_scale)
    assert out.shape == (B, H * dim_scale, W * dim_scale, c_out), out.shape
    err = float(jnp.max(jnp.abs(out - ref)))
    assert jnp.allclose(out, ref, atol=1e-4, rtol=1e-4), err

    print("KERNEL_OK")
</pallas_src>

<mosaic_0001>
module attributes {stable_mosaic.version = 11 : i64} {
  func.func @_expand_ln_kernel(%arg0: i32, %arg1: i32, %arg2: memref<64x32xf32, #tpu.memory_space<vmem>>, %arg3: memref<1x32x32xf32, #tpu.memory_space<vmem>>, %arg4: memref<1x32x4xf32, #tpu.memory_space<vmem>>, %arg5: memref<32x4xf32, #tpu.memory_space<vmem>>, %arg6: memref<4x32xf32, #tpu.memory_space<vmem>>, %arg7: memref<1x32xf32, #tpu.memory_space<vmem>>, %arg8: memref<1x32xf32, #tpu.memory_space<vmem>>, %arg9: memref<8x256xf32, #tpu.memory_space<vmem>>) attributes {dimension_semantics = [#tpu.dimension_semantics<parallel>, #tpu.dimension_semantics<parallel>], iteration_bounds = array<i64: 2, 4>, scalar_prefetch = 0 : i64, scratch_operands = 0 : i64, tpu.core_type = #tpu.core_type<tc>, window_params = [{transform_indices = @transform_0, window_bounds = array<i64: 64, 32>}, {transform_indices = @transform_1, window_bounds = array<i64: 1, 32, 32>}, {transform_indices = @transform_2, window_bounds = array<i64: 1, 32, 4>}, {pipeline_mode = #tpu.pipeline_mode<synchronous>, transform_indices = @transform_3, window_bounds = array<i64: 32, 4>}, {pipeline_mode = #tpu.pipeline_mode<synchronous>, transform_indices = @transform_4, window_bounds = array<i64: 4, 32>}, {pipeline_mode = #tpu.pipeline_mode<synchronous>, transform_indices = @transform_5, window_bounds = array<i64: 1, 32>}, {pipeline_mode = #tpu.pipeline_mode<synchronous>, transform_indices = @transform_6, window_bounds = array<i64: 1, 32>}, {transform_indices = @transform_7, window_bounds = array<i64: 8, 256>}]} {
    %c0 = arith.constant 0 : index
    %c0_0 = arith.constant 0 : index
    %0 = vector.load %arg2[%c0, %c0_0] : memref<64x32xf32, #tpu.memory_space<vmem>>, vector<64x32xf32>
    %c0_1 = arith.constant 0 : index
    %c0_2 = arith.constant 0 : index
    %c0_3 = arith.constant 0 : index
    %1 = vector.load %arg3[%c0_1, %c0_2, %c0_3] : memref<1x32x32xf32, #tpu.memory_space<vmem>>, vector<1x32x32xf32>
    %2 = vector.shape_cast %1 : vector<1x32x32xf32> to vector<32x32xf32>
    %cst = arith.constant dense<0.000000e+00> : vector<64x32xf32>
    %3 = tpu.matmul %0, %2, %cst {dimension_numbers = #tpu.dot_dimension_numbers<[1], [0], [0], [1], [0, 0, 1, 1], [], []>} : vector<64x32xf32>, vector<32x32xf32>, vector<64x32xf32> -> vector<64x32xf32>
    %c0_4 = arith.constant 0 : index
    %c0_5 = arith.constant 0 : index
    %c0_6 = arith.constant 0 : index
    %4 = vector.load %arg4[%c0_4, %c0_5, %c0_6] : memref<1x32x4xf32, #tpu.memory_space<vmem>>, vector<1x32x4xf32>
    %5 = vector.shape_cast %4 : vector<1x32x4xf32> to vector<32x4xf32>
    %cst_7 = arith.constant dense<0.000000e+00> : vector<64x4xf32>
    %6 = tpu.matmul %0, %5, %cst_7 {dimension_numbers = #tpu.dot_dimension_numbers<[1], [0], [0], [1], [0, 0, 1, 1], [], []>} : vector<64x32xf32>, vector<32x4xf32>, vector<64x4xf32> -> vector<64x4xf32>
    %cst_8 = arith.constant 1.250000e-01 : f32
    %7 = vector.broadcast %cst_8 : f32 to vector<64x4xf32>
    %8 = arith.mulf %6, %7 : vector<64x4xf32>
    %9 = arith.mulf %3, %3 : vector<64x32xf32>
    %c0_9 = arith.constant 0 : index
    %c0_10 = arith.constant 0 : index
    %10 = vector.load %arg5[%c0_9, %c0_10] : memref<32x4xf32, #tpu.memory_space<vmem>>, vector<32x4xf32>
    %cst_11 = arith.constant dense<0.000000e+00> : vector<64x4xf32>
    %11 = tpu.matmul %9, %10, %cst_11 {dimension_numbers = #tpu.dot_dimension_numbers<[1], [0], [0], [1], [0, 0, 1, 1], [], []>} : vector<64x32xf32>, vector<32x4xf32>, vector<64x4xf32> -> vector<64x4xf32>
    %cst_12 = arith.constant 1.250000e-01 : f32
    %12 = vector.broadcast %cst_12 : f32 to vector<64x4xf32>
    %13 = arith.mulf %11, %12 : vector<64x4xf32>
    %14 = arith.mulf %8, %8 : vector<64x4xf32>
    %15 = arith.subf %13, %14 : vector<64x4xf32>
    %cst_13 = arith.constant 9.99999974E-6 : f32
    %16 = vector.broadcast %cst_13 : f32 to vector<64x4xf32>
    %17 = arith.addf %15, %16 : vector<64x4xf32>
    %18 = math.rsqrt %17 : vector<64x4xf32>
    %c0_14 = arith.constant 0 : index
    %c0_15 = arith.constant 0 : index
    %19 = vector.load %arg6[%c0_14, %c0_15] : memref<4x32xf32, #tpu.memory_space<vmem>>, vector<4x32xf32>
    %cst_16 = arith.constant dense<0.000000e+00> : vector<64x32xf32>
    %20 = tpu.matmul %8, %19, %cst_16 {dimension_numbers = #tpu.dot_dimension_numbers<[1], [0], [0], [1], [0, 0, 1, 1], [], []>} : vector<64x4xf32>, vector<4x32xf32>, vector<64x32xf32> -> vector<64x32xf32>
    %c0_17 = arith.constant 0 : index
    %c0_18 = arith.constant 0 : index
    %21 = vector.load %arg6[%c0_17, %c0_18] : memref<4x32xf32, #tpu.memory_space<vmem>>, vector<4x32xf32>
    %cst_19 = arith.constant dense<0.000000e+00> : vector<64x32xf32>
    %22 = tpu.matmul %18, %21, %cst_19 {dimension_numbers = #tpu.dot_dimension_numbers<[1], [0], [0], [1], [0, 0, 1, 1], [], []>} : vector<64x4xf32>, vector<4x32xf32>, vector<64x32xf32> -> vector<64x32xf32>
    %23 = arith.subf %3, %20 : vector<64x32xf32>
    %24 = arith.mulf %23, %22 : vector<64x32xf32>
    %c0_20 = arith.constant 0 : index
    %c0_21 = arith.constant 0 : index
    %25 = vector.load %arg7[%c0_20, %c0_21] : memref<1x32xf32, #tpu.memory_space<vmem>>, vector<1x32xf32>
    %26 = vector.broadcast %25 : vector<1x32xf32> to vector<64x32xf32>
    %27 = arith.mulf %24, %26 : vector<64x32xf32>
    %c0_22 = arith.constant 0 : index
    %c0_23 = arith.constant 0 : index
    %28 = vector.load %arg8[%c0_22, %c0_23] : memref<1x32xf32, #tpu.memory_space<vmem>>, vector<1x32xf32>
    %29 = vector.broadcast %28 : vector<1x32xf32> to vector<64x32xf32>
    %30 = arith.addf %27, %29 : vector<64x32xf32>
    %31 = vector.shape_cast %30 : vector<64x32xf32> to vector<8x8x32xf32>
    %32 = vector.extract_strided_slice %31 {offsets = [0, 0, 0], sizes = [8, 1, 32], strides = [1, 1, 1]} : vector<8x8x32xf32> to vector<8x1x32xf32>
    %33 = vector.shape_cast %32 : vector<8x1x32xf32> to vector<8x32xf32>
    %34 = vector.extract_strided_slice %31 {offsets = [0, 1, 0], sizes = [8, 1, 32], strides = [1, 1, 1]} : vector<8x8x32xf32> to vector<8x1x32xf32>
    %35 = vector.shape_cast %34 : vector<8x1x32xf32> to vector<8x32xf32>
    %36 = vector.extract_strided_slice %31 {offsets = [0, 2, 0], sizes = [8, 1, 32], strides = [1, 1, 1]} : vector<8x8x32xf32> to vector<8x1x32xf32>
    %37 = vector.shape_cast %36 : vector<8x1x32xf32> to vector<8x32xf32>
    %38 = vector.extract_strided_slice %31 {offsets = [0, 3, 0], sizes = [8, 1, 32], strides = [1, 1, 1]} : vector<8x8x32xf32> to vector<8x1x32xf32>
    %39 = vector.shape_cast %38 : vector<8x1x32xf32> to vector<8x32xf32>
    %40 = vector.extract_strided_slice %31 {offsets = [0, 4, 0], sizes = [8, 1, 32], strides = [1, 1, 1]} : vector<8x8x32xf32> to vector<8x1x32xf32>
    %41 = vector.shape_cast %40 : vector<8x1x32xf32> to vector<8x32xf32>
    %42 = vector.extract_strided_slice %31 {offsets = [0, 5, 0], sizes = [8, 1, 32], strides = [1, 1, 1]} : vector<8x8x32xf32> to vector<8x1x32xf32>
    %43 = vector.shape_cast %42 : vector<8x1x32xf32> to vector<8x32xf32>
    %44 = vector.extract_strided_slice %31 {offsets = [0, 6, 0], sizes = [8, 1, 32], strides = [1, 1, 1]} : vector<8x8x32xf32> to vector<8x1x32xf32>
    %45 = vector.shape_cast %44 : vector<8x1x32xf32> to vector<8x32xf32>
    %46 = vector.extract_strided_slice %31 {offsets = [0, 7, 0], sizes = [8, 1, 32], strides = [1, 1, 1]} : vector<8x8x32xf32> to vector<8x1x32xf32>
    %47 = vector.shape_cast %46 : vector<8x1x32xf32> to vector<8x32xf32>
    %48 = tpu.concatenate %33, %35, %37, %39, %41, %43, %45, %47 in 1 : vector<8x32xf32>, vector<8x32xf32>, vector<8x32xf32>, vector<8x32xf32>, vector<8x32xf32>, vector<8x32xf32>, vector<8x32xf32>, vector<8x32xf32> -> vector<8x256xf32>
    %c0_24 = arith.constant 0 : index
    %c0_25 = arith.constant 0 : index
    %49 = vector.load %arg9[%c0_24, %c0_25] : memref<8x256xf32, #tpu.memory_space<vmem>>, vector<8x256xf32>
    tpu.vector_store %arg9[%c0_24, %c0_25], %48 {strides = array<i32>} : memref<8x256xf32, #tpu.memory_space<vmem>>, vector<8x256xf32>,
    return
  }
  func.func @transform_0(%arg0: i32, %arg1: i32) -> (i32, i32) {
    %c0_i32 = arith.constant 0 : i32
    %c0_i32_0 = arith.constant 0 : i32
    return %arg0, %c0_i32 : i32, i32
  }
  func.func @transform_1(%arg0: i32, %arg1: i32) -> (i32, i32, i32) {
    %c0_i32 = arith.constant 0 : i32
    %c0_i32_0 = arith.constant 0 : i32
    %c0_i32_1 = arith.constant 0 : i32
    return %arg1, %c0_i32, %c0_i32_0 : i32, i32, i32
  }
  func.func @transform_2(%arg0: i32, %arg1: i32) -> (i32, i32, i32) {
    %c0_i32 = arith.constant 0 : i32
    %c0_i32_0 = arith.constant 0 : i32
    %c0_i32_1 = arith.constant 0 : i32
    return %arg1, %c0_i32, %c0_i32_0 : i32, i32, i32
  }
  func.func @transform_3(%arg0: i32, %arg1: i32) -> (i32, i32) {
    %c0_i32 = arith.constant 0 : i32
    %c0_i32_0 = arith.constant 0 : i32
    %c0_i32_1 = arith.constant 0 : i32
    return %c0_i32, %c0_i32_0 : i32, i32
  }
  func.func @transform_4(%arg0: i32, %arg1: i32) -> (i32, i32) {
    %c0_i32 = arith.constant 0 : i32
    %c0_i32_0 = arith.constant 0 : i32
    %c0_i32_1 = arith.constant 0 : i32
    return %c0_i32, %c0_i32_0 : i32, i32
  }
  func.func @transform_5(%arg0: i32, %arg1: i32) -> (i32, i32) {
    %c0_i32 = arith.constant 0 : i32
    %c0_i32_0 = arith.constant 0 : i32
    %c0_i32_1 = arith.constant 0 : i32
    return %c0_i32, %c0_i32_0 : i32, i32
  }
  func.func @transform_6(%arg0: i32, %arg1: i32) -> (i32, i32) {
    %c0_i32 = arith.constant 0 : i32
    %c0_i32_0 = arith.constant 0 : i32
    %c0_i32_1 = arith.constant 0 : i32
    return %c0_i32, %c0_i32_0 : i32, i32
  }
  func.func @transform_7(%arg0: i32, %arg1: i32) -> (i32, i32) {
    %c0_i32 = arith.constant 0 : i32
    return %arg0, %arg1 : i32, i32
  }
}

</mosaic_0001>

<llo_original>
// kernel: tpu_custom_call.1
$region0: #{tpu_custom_call.1}
  #allocation0 [shape = 'u32[]', space=smem, size = 0x4, offset = 0x4, fixed_abs, tag = 'smem constant byte address 0x4 - core index']
  #allocation1 [shape = 'u32[72,128]{1,0:T(1,128)}', space=vmem, size = 0x9000, scoped, tag = 'internal scratch']
  %s0 = inlined_call_operand.vmem [shape: f32[128,32], index: 0, kind: input, shape index: {}]
  %s1 = inlined_call_operand.vmem [shape: f32[4,32,32], index: 1, kind: input, shape index: {}]
  %s2 = inlined_call_operand.vmem [shape: f32[4,32,4], index: 2, kind: input, shape index: {}]
  %s3 = inlined_call_operand.vmem [shape: f32[32,4], index: 3, kind: input, shape index: {}]
  %s4 = inlined_call_operand.vmem [shape: f32[4,32], index: 4, kind: input, shape index: {}]
  %s5 = inlined_call_operand.vmem [shape: f32[1,32], index: 5, kind: input, shape index: {}]
  %s6 = inlined_call_operand.vmem [shape: f32[1,32], index: 6, kind: input, shape index: {}]
  %s7 = inlined_call_operand.hbm [shape: f32[16,1024], index: 7, kind: output, shape index: {}]
  %s8 = sld [smem:[#allocation0]]
  $region61: #{tpu_custom_call.1} parent=0
    _
  %s10 = ssub.s32 1, %s8
  %s11 = scalar_select 0, %s10, %s8
  $region1: #{tpu_custom_call.1} parent=0
    #allocation2 [shape = 'u8[16384]{0}', space=vmem, size = 0x4000, scoped, tag = 'output window, operand 0']
    #allocation3 [shape = 's32[2]{0}', space=sflag, size = 0x8, scoped, tag = 'scoped memory for tpu_custom_call.1']
    %12 = vsyncpa [#allocation3], 0
    %s13 = scalar_lea.sflag [#allocation3], 1
    %14 = vsyncpa %s13, 0
    loop: start=0, step=1, limit=10
    $region2: #{tpu_custom_call.1} parent=1 // loop_pre_header
      _
    $region3: #{tpu_custom_call.1} parent=1 // loop_header
      %s16 = sphi 0, %s20
      %p17 = scmp.ge.s32.totalorder %s16, 10
      %s23 = sphi 0, %s35
      %s24 = sphi 0, %s31
      %s25 = sphi 0, %s23
      %s26 = sphi 0, %s24
      %s27 = sphi 0, %s25
      %s28 = sphi 0, %s26
      %s38 = sphi 0, %s40
      %s41 = sphi 0, %s38
      %s42 = sphi 0, %s41
      %s58 = sphi 0, %s42
      %s64 = sphi 0, %s66
      %s67 = sphi 0, %s64
      %s68 = sphi 0, %s67
      %s84 = sphi 0, %s68
      %s90 = sphi 0, %s92
      %s93 = sphi 0, %s90
      %s94 = sphi 0, %s93
      %s110 = sphi 0, %s94
      %s114 = sphi 0, %s114
      %s116 = sphi 0, %s114
      %s117 = sphi 0, %s116
      %s131 = sphi 0, %s117
      %s135 = sphi 0, %s135
      %s137 = sphi 0, %s135
      %s138 = sphi 0, %s137
      %s152 = sphi 0, %s138
      %s156 = sphi 0, %s156
      %s158 = sphi 0, %s156
      %s159 = sphi 0, %s158
      %s173 = sphi 0, %s159
      %s177 = sphi 0, %s177
      %s179 = sphi 0, %s177
      %s180 = sphi 0, %s179
      %s194 = sphi 0, %s180
      %s202 = sphi 0, %s204
      %s205 = sphi 0, %s202
      %s206 = sphi 0, %s205
      %s222 = sphi 0, %s206
    $region4: #{tpu_custom_call.1} parent=1 // loop_header_branch
      %19 = sbr.rel (%p17) target = $region8
    $region5: #{tpu_custom_call.1} parent=1 // loop_body
      %s21 = ssub.s32 %s16, 1
      %s22 = ssub.s32 %s16, 2
      %s29 = sadd.s32 1, %s24
      %p30 = scmp.ge.s32.totalorder %s29, 4
      %s31 = scalar_select %p30, 0, %s29
      %s32 = sadd.s32 1, %s23
      %s33 = scalar_select %p30, %s32, %s23
      %p34 = scmp.ge.s32.totalorder %s33, 2
      %s35 = scalar_select %p34, 0, %s33
      %s36 = ssub.s32 %s23, %s35
      %p37 = scmp.eq.s32.totalorder %s36, 0
      %s39 = sadd.s32 %s38, 1
      %s40 = scalar_select %p37, %s38, %s39
      %p43 = pneg %p37
      %p44 = scmp.eq.s32.totalorder %s16, 7
      %p45 = por %p43, %p44
      %p46 = scmp.ne.s32.totalorder %s38, %s41
      %p47 = scmp.eq.s32.totalorder %s16, 0
      %p48 = por %p46, %p47
      %p49 = scmp.ne.s32.totalorder %s38, %s41
      %p50 = scmp.eq.s32.totalorder %s21, 7
      %p51 = por %p49, %p50
      %p52 = scmp.ne.s32.totalorder %s41, %s42
      %p53 = scmp.eq.s32.totalorder %s21, 0
      %p54 = por %p52, %p53
      %p55 = scmp.ne.s32.totalorder %s41, %s42
      %p56 = scmp.eq.s32.totalorder %s22, 7
      %p57 = por %p55, %p56
      %p59 = scmp.ne.s32.totalorder %s42, %s58
      %p60 = scmp.eq.s32.totalorder %s22, 0
      %p61 = por %p59, %p60
      %s62 = ssub.s32 %s24, %s31
      %p63 = scmp.eq.s32.totalorder %s62, 0
      %s65 = sadd.s32 %s64, 1
      %s66 = scalar_select %p63, %s64, %s65
      %p69 = pneg %p63
      %p70 = scmp.eq.s32.totalorder %s16, 7
      %p71 = por %p69, %p70
      %p72 = scmp.ne.s32.totalorder %s64, %s67
      %p73 = scmp.eq.s32.totalorder %s16, 0
      %p74 = por %p72, %p73
      %p75 = scmp.ne.s32.totalorder %s64, %s67
      %p76 = scmp.eq.s32.totalorder %s21, 7
      %p77 = por %p75, %p76
      %p78 = scmp.ne.s32.totalorder %s67, %s68
      %p79 = scmp.eq.s32.totalorder %s21, 0
      %p80 = por %p78, %p79
      %p81 = scmp.ne.s32.totalorder %s67, %s68
      %p82 = scmp.eq.s32.totalorder %s22, 7
      %p83 = por %p81, %p82
      %p85 = scmp.ne.s32.totalorder %s68, %s84
      %p86 = scmp.eq.s32.totalorder %s22, 0
      %p87 = por %p85, %p86
      %s88 = ssub.s32 %s24, %s31
      %p89 = scmp.eq.s32.totalorder %s88, 0
      %s91 = sadd.s32 %s90, 1
      %s92 = scalar_select %p89, %s90, %s91
      %p95 = pneg %p89
      %p96 = scmp.eq.s32.totalorder %s16, 7
      %p97 = por %p95, %p96
      %p98 = scmp.ne.s32.totalorder %s90, %s93
      %p99 = scmp.eq.s32.totalorder %s16, 0
      %p100 = por %p98, %p99
      %p101 = scmp.ne.s32.totalorder %s90, %s93
      %p102 = scmp.eq.s32.totalorder %s21, 7
      %p103 = por %p101, %p102
      %p104 = scmp.ne.s32.totalorder %s93, %s94
      %p105 = scmp.eq.s32.totalorder %s21, 0
      %p106 = por %p104, %p105
      %p107 = scmp.ne.s32.totalorder %s93, %s94
      %p108 = scmp.eq.s32.totalorder %s22, 7
      %p109 = por %p107, %p108
      %p111 = scmp.ne.s32.totalorder %s94, %s110
      %p112 = scmp.eq.s32.totalorder %s22, 0
      %p113 = por %p111, %p112
      %s115 = sadd.s32 %s114, 1
      %p118 = scmp.eq.s32.totalorder %s16, 7
      %p119 = scmp.ne.s32.totalorder %s114, %s116
      %p120 = scmp.eq.s32.totalorder %s16, 0
      %p121 = por %p119, %p120
      %p122 = scmp.ne.s32.totalorder %s114, %s116
      %p123 = scmp.eq.s32.totalorder %s21, 7
      %p124 = por %p122, %p123
      %p125 = scmp.ne.s32.totalorder %s116, %s117
      %p126 = scmp.eq.s32.totalorder %s21, 0
      %p127 = por %p125, %p126
      %p128 = scmp.ne.s32.totalorder %s116, %s117
      %p129 = scmp.eq.s32.totalorder %s22, 7
      %p130 = por %p128, %p129
      %p132 = scmp.ne.s32.totalorder %s117, %s131
      %p133 = scmp.eq.s32.totalorder %s22, 0
      %p134 = por %p132, %p133
      %s136 = sadd.s32 %s135, 1
      %p139 = scmp.eq.s32.totalorder %s16, 7
      %p140 = scmp.ne.s32.totalorder %s135, %s137
      %p141 = scmp.eq.s32.totalorder %s16, 0
      %p142 = por %p140, %p141
      %p143 = scmp.ne.s32.totalorder %s135, %s137
      %p144 = scmp.eq.s32.totalorder %s21, 7
      %p145 = por %p143, %p144
      %p146 = scmp.ne.s32.totalorder %s137, %s138
      %p147 = scmp.eq.s32.totalorder %s21, 0
      %p148 = por %p146, %p147
      %p149 = scmp.ne.s32.totalorder %s137, %s138
      %p150 = scmp.eq.s32.totalorder %s22, 7
      %p151 = por %p149, %p150
      %p153 = scmp.ne.s32.totalorder %s138, %s152
      %p154 = scmp.eq.s32.totalorder %s22, 0
      %p155 = por %p153, %p154
      %s157 = sadd.s32 %s156, 1
      %p160 = scmp.eq.s32.totalorder %s16, 7
      %p161 = scmp.ne.s32.totalorder %s156, %s158
      %p162 = scmp.eq.s32.totalorder %s16, 0
      %p163 = por %p161, %p162
      %p164 = scmp.ne.s32.totalorder %s156, %s158
      %p165 = scmp.eq.s32.totalorder %s21, 7
      %p166 = por %p164, %p165
      %p167 = scmp.ne.s32.totalorder %s158, %s159
      %p168 = scmp.eq.s32.totalorder %s21, 0
      %p169 = por %p167, %p168
      %p170 = scmp.ne.s32.totalorder %s158, %s159
      %p171 = scmp.eq.s32.totalorder %s22, 7
      %p172 = por %p170, %p171
      %p174 = scmp.ne.s32.totalorder %s159, %s173
      %p175 = scmp.eq.s32.totalorder %s22, 0
      %p176 = por %p174, %p175
      %s178 = sadd.s32 %s177, 1
      %p181 = scmp.eq.s32.totalorder %s16, 7
      %p182 = scmp.ne.s32.totalorder %s177, %s179
      %p183 = scmp.eq.s32.totalorder %s16, 0
      %p184 = por %p182, %p183
      %p185 = scmp.ne.s32.totalorder %s177, %s179
      %p186 = scmp.eq.s32.totalorder %s21, 7
      %p187 = por %p185, %p186
      %p188 = scmp.ne.s32.totalorder %s179, %s180
      %p189 = scmp.eq.s32.totalorder %s21, 0
      %p190 = por %p188, %p189
      %p191 = scmp.ne.s32.totalorder %s179, %s180
      %p192 = scmp.eq.s32.totalorder %s22, 7
      %p193 = por %p191, %p192
      %p195 = scmp.ne.s32.totalorder %s180, %s194
      %p196 = scmp.eq.s32.totalorder %s22, 0
      %p197 = por %p195, %p196
      %s198 = ssub.s32 %s23, %s35
      %s199 = ssub.s32 %s24, %s31
      %s200 = sor.u32 %s198, %s199
      %p201 = scmp.eq.s32.totalorder %s200, 0
      %s203 = sadd.s32 %s202, 1
      %s204 = scalar_select %p201, %s202, %s203
      %p207 = pneg %p201
      %p208 = scmp.eq.s32.totalorder %s16, 7
      %p209 = por %p207, %p208
      %p210 = scmp.ne.s32.totalorder %s202, %s205
      %p211 = scmp.eq.s32.totalorder %s16, 0
      %p212 = por %p210, %p211
      %p213 = scmp.ne.s32.totalorder %s202, %s205
      %p214 = scmp.eq.s32.totalorder %s21, 7
      %p215 = por %p213, %p214
      %p216 = scmp.ne.s32.totalorder %s205, %s206
      %p217 = scmp.eq.s32.totalorder %s21, 0
      %p218 = por %p216, %p217
      %p219 = scmp.ne.s32.totalorder %s205, %s206
      %p220 = scmp.eq.s32.totalorder %s22, 7
      %p221 = por %p219, %p220
      %p223 = scmp.ne.s32.totalorder %s206, %s222
      %p224 = scmp.eq.s32.totalorder %s22, 0
      %p225 = por %p223, %p224
      %p226 = scmp.le.s32.totalorder 1, %s16
      %p227 = scmp.lt.s32.totalorder %s16, 9
      %p228 = pnand %p226, %p227
      %p229 = pneg %p228
      // Predicated region
      $region9: #{tpu_custom_call.1} parent=5 // pred_check
        _
      $region10: #{tpu_custom_call.1} parent=5 // pred_check_branch
        %231 = sbr.rel (%p228) target = $region12
      $region11: #{tpu_custom_call.1} parent=5 // pred_region
        %s232 = ssub.s32 %s16, 1
        // Predicated region
        $region13: #{tpu_custom_call.1} parent=11 // pred_check
          %p233 = pneg %p127
        $region14: #{tpu_custom_call.1} parent=11 // pred_check_branch
          %235 = sbr.rel (%p233) target = $region16
        $region15: #{tpu_custom_call.1} parent=11 // pred_region
          _
        $region16: #{tpu_custom_call.1} parent=11 // pred_fallthru
          _
        // Predicated region
        $region17: #{tpu_custom_call.1} parent=11 // pred_check
          %p236 = pneg %p148
        $region18: #{tpu_custom_call.1} parent=11 // pred_check_branch
          %238 = sbr.rel (%p236) target = $region20
        $region19: #{tpu_custom_call.1} parent=11 // pred_region
          _
        $region20: #{tpu_custom_call.1} parent=11 // pred_fallthru
          _
        // Predicated region
        $region21: #{tpu_custom_call.1} parent=11 // pred_check
          %p239 = pneg %p169
        $region22: #{tpu_custom_call.1} parent=11 // pred_check_branch
          %241 = sbr.rel (%p239) target = $region24
        $region23: #{tpu_custom_call.1} parent=11 // pred_region
          _
        $region24: #{tpu_custom_call.1} parent=11 // pred_fallthru
          _
        // Predicated region
        $region25: #{tpu_custom_call.1} parent=11 // pred_check
          %p242 = pneg %p190
        $region26: #{tpu_custom_call.1} parent=11 // pred_check_branch
          %244 = sbr.rel (%p242) target = $region28
        $region27: #{tpu_custom_call.1} parent=11 // pred_region
          _
        $region28: #{tpu_custom_call.1} parent=11 // pred_fallthru
          _
      $region12: #{tpu_custom_call.1} parent=5 // pred_fallthru
        _
      %p245 = scmp.lt.s32.totalorder %s16, 8
      // Predicated region
      $region29: #{tpu_custom_call.1} parent=5 // pred_check
        %p246 = pneg %p245
      $region30: #{tpu_custom_call.1} parent=5 // pred_check_branch
        %248 = sbr.rel (%p246) target = $region32
      $region31: #{tpu_custom_call.1} parent=5 // pred_region
        // Predicated region
        $region33: #{tpu_custom_call.1} parent=31 // pred_check
          %p249 = pneg %p48
        $region34: #{tpu_custom_call.1} parent=31 // pred_check_branch
          %251 = sbr.rel (%p249) target = $region36
        $region35: #{tpu_custom_call.1} parent=31 // pred_region
          %s252 = smul.u32 8, %s23
          %p253 = scmp.lt.s32.totalorder %s252, 15
          %s254 = scalar_select %p253, %s252, 15
          %s255 = smul.addr %s254, 8
          %s256 = scalar_lea.vmem %s0, %s255
          %s257 = smul.u32 8, %s23
        $region36: #{tpu_custom_call.1} parent=31 // pred_fallthru
          _
        // Predicated region
        $region37: #{tpu_custom_call.1} parent=31 // pred_check
          %p258 = pneg %p74
        $region38: #{tpu_custom_call.1} parent=31 // pred_check_branch
          %260 = sbr.rel (%p258) target = $region40
        $region39: #{tpu_custom_call.1} parent=31 // pred_region
          %p261 = scmp.lt.s32.totalorder %s24, 3
          %s262 = scalar_select %p261, %s24, 3
          %s263 = smul.addr %s262, 4
          %s264 = smul.addr %s263, 8
          %s265 = scalar_lea.vmem %s1, %s264
        $region40: #{tpu_custom_call.1} parent=31 // pred_fallthru
          _
        // Predicated region
        $region41: #{tpu_custom_call.1} parent=31 // pred_check
          %p266 = pneg %p100
        $region42: #{tpu_custom_call.1} parent=31 // pred_check_branch
          %268 = sbr.rel (%p266) target = $region44
        $region43: #{tpu_custom_call.1} parent=31 // pred_region
          %p269 = scmp.lt.s32.totalorder %s24, 3
          %s270 = scalar_select %p269, %s24, 3
          %s271 = smul.addr %s270, 4
          %s272 = smul.addr %s271, 8
          %s273 = scalar_lea.vmem %s2, %s272
        $region44: #{tpu_custom_call.1} parent=31 // pred_fallthru
          _
      $region32: #{tpu_custom_call.1} parent=5 // pred_fallthru
        _
      %p274 = scmp.le.s32.totalorder 1, %s16
      %p275 = scmp.lt.s32.totalorder %s16, 9
      %p276 = pnand %p274, %p275
      %p277 = pneg %p276
      // Predicated region
      $region45: #{tpu_custom_call.1} parent=5 // pred_check
        _
      $region46: #{tpu_custom_call.1} parent=5 // pred_check_branch
        %279 = sbr.rel (%p276) target = $region48
      $region47: #{tpu_custom_call.1} parent=5 // pred_region
        %s280 = ssub.s32 %s16, 1
        %s281 = smul.u32 8, %s25
        %p282 = scmp.lt.s32.totalorder %s281, 15
        %s283 = scalar_select %p282, %s281, 15
        %s284 = smul.addr %s283, 8
        %s285 = scalar_lea.vmem %s0, %s284
        %p286 = pneg %p54
        %p287 = pneg %p51
        %p288 = scmp.lt.s32.totalorder %s26, 3
        %s289 = scalar_select %p288, %s26, 3
        %s290 = smul.addr %s289, 4
        %s291 = smul.addr %s290, 8
        %s292 = scalar_lea.vmem %s1, %s291
        %p293 = pneg %p80
        %p294 = pneg %p77
        %p295 = scmp.lt.s32.totalorder %s26, 3
        %s296 = scalar_select %p295, %s26, 3
        %s297 = smul.addr %s296, 4
        %s298 = smul.addr %s297, 8
        %s299 = scalar_lea.vmem %s2, %s298
        %p300 = pneg %p106
        %p301 = pneg %p103
        %p302 = pneg %p127
        %p303 = pneg %p124
        %p304 = pneg %p148
        %p305 = pneg %p145
        %p306 = pneg %p169
        %p307 = pneg %p166
        %p308 = pneg %p190
        %p309 = pneg %p187
        %p310 = pneg %p218
        %p311 = pneg %p215
        %s312 = sand.u32 %s205, 1
        %s313 = scalar_lea.sflag [#allocation3], %s312
        %s314 = sand.u32 %s205, 1
        %s315 = smul.addr %s314, 16
        %s316 = scalar_lea.vmem [#allocation2], %s315
        %s317 = smul.u32 8, %s25
        %p318 = scmp.lt.s32.totalorder %s317, 15
        %s319 = scalar_select %p318, %s317, 15
        %s320 = smul.addr %s319, 8
        %s321 = scalar_lea.vmem %s0, %s320
        %s322 = smul.u32 8, %s25
        %p323 = scmp.lt.s32.totalorder %s26, 3
        %s324 = scalar_select %p323, %s26, 3
        %s325 = smul.addr %s324, 4
        %s326 = smul.addr %s325, 8
        %s327 = scalar_lea.vmem %s1, %s326
        %p328 = scmp.lt.s32.totalorder %s26, 3
        %s329 = scalar_select %p328, %s26, 3
        %s330 = smul.addr %s329, 4
        %s331 = smul.addr %s330, 8
        %s332 = scalar_lea.vmem %s2, %s331
        %s333 = smul.u32 2, %s26
        %v334 = vld [vmem:[%s321] sm:$0xff]
        %v335 = vld [vmem:[%s321 + $0x8] sm:$0xff]
        %v336 = vld [vmem:[%s321 + $0x10] sm:$0xff]
        %v337 = vld [vmem:[%s321 + $0x18] sm:$0xff]
        %v338 = vld [vmem:[%s321 + $0x20] sm:$0xff]
        %v339 = vld [vmem:[%s321 + $0x28] sm:$0xff]
        %v340 = vld [vmem:[%s321 + $0x30] sm:$0xff]
        %v341 = vld [vmem:[%s321 + $0x38] sm:$0xff]
        %v342 = vld [vmem:[%s327] sm:$0xff]
        %v343 = vld [vmem:[%s327 + $0x8] sm:$0xff]
        %v344 = vld [vmem:[%s327 + $0x10] sm:$0xff]
        %v345 = vld [vmem:[%s327 + $0x18] sm:$0xff]
        %vm346 = vcmask 261120
        %v348 = vsel %vm346, %v334, 0
        %v351 = vsel %vm346, %v335, 0
        %v354 = vsel %vm346, %v336, 0
        %v357 = vsel %vm346, %v337, 0
        %v360 = vsel %vm346, %v338, 0
        %v363 = vsel %vm346, %v339, 0
        %v366 = vsel %vm346, %v340, 0
        %v369 = vsel %vm346, %v341, 0
        %371 = vmatpush.msra.mxu0 0.0
        %372 = vmatpush.msra.mxu0 0.0
        %373 = vmatpush.msra.mxu0 0.0
        %374 = vmatpush.msra.mxu0 0.0
        %375 = vmatpush.msra.mxu0 0.0
        %376 = vmatpush.msra.mxu0 0.0
        %377 = vmatpush.msra.mxu0 0.0
        %378 = vmatpush.msra.mxu0 0.0
        %379 = vmatpush.msra.mxu0 0.0
        %380 = vmatpush.msra.mxu0 0.0
        %381 = vmatpush.msra.mxu0 0.0
        %382 = vmatpush.msra.mxu0 0.0
        %383 = vmatpush.msra.mxu0 %v345
        %384 = vmatpush.msra.mxu0 %v344
        %385 = vmatpush.msra.mxu0 %v343
        %386 = vmatpush.msra.mxu0 %v342
        %387 = vmatmul.f32.gmra.mxu0 %v348
        %v388 = vpop.f32.mrf.mxu0
        %v389 = vadd.f32 0.0, %v388
        %390 = vmatmul.f32.gmra.mxu0 %v351
        %v391 = vpop.f32.mrf.mxu0
        %v392 = vadd.f32 0.0, %v391
        %393 = vmatmul.f32.gmra.mxu0 %v354
        %v394 = vpop.f32.mrf.mxu0
        %v395 = vadd.f32 0.0, %v394
        %396 = vmatmul.f32.gmra.mxu0 %v357
        %v397 = vpop.f32.mrf.mxu0
        %v398 = vadd.f32 0.0, %v397
        %399 = vmatmul.f32.gmra.mxu0 %v360
        %v400 = vpop.f32.mrf.mxu0
        %v401 = vadd.f32 0.0, %v400
        %402 = vmatmul.f32.gmra.mxu0 %v363
        %v403 = vpop.f32.mrf.mxu0
        %v404 = vadd.f32 0.0, %v403
        %405 = vmatmul.f32.gmra.mxu0 %v366
        %v406 = vpop.f32.mrf.mxu0
        %v407 = vadd.f32 0.0, %v406
        %408 = vmatmul.f32.gmra.mxu0 %v369
        %v409 = vpop.f32.mrf.mxu0
        %v410 = vadd.f32 0.0, %v409
        %411 = vdwg.mxu0
        %v412 = vld [vmem:[%s332] sm:$0xff]
        %v413 = vld [vmem:[%s332 + $0x8] sm:$0xff]
        %v414 = vld [vmem:[%s332 + $0x10] sm:$0xff]
        %v415 = vld [vmem:[%s332 + $0x18] sm:$0xff]
        %416 = vmatpush.msra.mxu0 0.0
        %417 = vmatpush.msra.mxu0 0.0
        %418 = vmatpush.msra.mxu0 0.0
        %419 = vmatpush.msra.mxu0 0.0
        %420 = vmatpush.msra.mxu0 0.0
        %421 = vmatpush.msra.mxu0 0.0
        %422 = vmatpush.msra.mxu0 0.0
        %423 = vmatpush.msra.mxu0 0.0
        %424 = vmatpush.msra.mxu0 0.0
        %425 = vmatpush.msra.mxu0 0.0
        %426 = vmatpush.msra.mxu0 0.0
        %427 = vmatpush.msra.mxu0 0.0
        %428 = vmatpush.msra.mxu0 %v415
        %429 = vmatpush.msra.mxu0 %v414
        %430 = vmatpush.msra.mxu0 %v413
        %431 = vmatpush.msra.mxu0 %v412
        %432 = vmatmul.f32.gmra.mxu0 %v348
        %v433 = vpop.f32.mrf.mxu0
        %v434 = vadd.f32 0.0, %v433
        %435 = vmatmul.f32.gmra.mxu0 %v351
        %v436 = vpop.f32.mrf.mxu0
        %v437 = vadd.f32 0.0, %v436
        %438 = vmatmul.f32.gmra.mxu0 %v354
        %v439 = vpop.f32.mrf.mxu0
        %v440 = vadd.f32 0.0, %v439
        %441 = vmatmul.f32.gmra.mxu0 %v357
        %v442 = vpop.f32.mrf.mxu0
        %v443 = vadd.f32 0.0, %v442
        %444 = vmatmul.f32.gmra.mxu0 %v360
        %v445 = vpop.f32.mrf.mxu0
        %v446 = vadd.f32 0.0, %v445
        %447 = vmatmul.f32.gmra.mxu0 %v363
        %v448 = vpop.f32.mrf.mxu0
        %v449 = vadd.f32 0.0, %v448
        %450 = vmatmul.f32.gmra.mxu0 %v366
        %v451 = vpop.f32.mrf.mxu0
        %v452 = vadd.f32 0.0, %v451
        %453 = vmatmul.f32.gmra.mxu0 %v369
        %v454 = vpop.f32.mrf.mxu0
        %v455 = vadd.f32 0.0, %v454
        %456 = vdwg.mxu0
        %v457 = vmul.f32 %v434, 0.125
        %v458 = vmul.f32 %v437, 0.125
        %v459 = vmul.f32 %v440, 0.125
        %v460 = vmul.f32 %v443, 0.125
        %v461 = vmul.f32 %v446, 0.125
        %v462 = vmul.f32 %v449, 0.125
        %v463 = vmul.f32 %v452, 0.125
        %v464 = vmul.f32 %v455, 0.125
        %v465 = vmul.f32 %v389, %v389
        %v466 = vmul.f32 %v392, %v392
        %v467 = vmul.f32 %v395, %v395
        %v468 = vmul.f32 %v398, %v398
        %v469 = vmul.f32 %v401, %v401
        %v470 = vmul.f32 %v404, %v404
        %v471 = vmul.f32 %v407, %v407
        %v472 = vmul.f32 %v410, %v410
        %v473 = vld [vmem:[%s3] sm:$0xff]
        %v474 = vld [vmem:[%s3 + $0x8] sm:$0xff]
        %v475 = vld [vmem:[%s3 + $0x10] sm:$0xff]
        %v476 = vld [vmem:[%s3 + $0x18] sm:$0xff]
        %v478 = vsel %vm346, %v465, 0
        %v481 = vsel %vm346, %v466, 0
        %v484 = vsel %vm346, %v467, 0
        %v487 = vsel %vm346, %v468, 0
        %v490 = vsel %vm346, %v469, 0
        %v493 = vsel %vm346, %v470, 0
        %v496 = vsel %vm346, %v471, 0
        %v499 = vsel %vm346, %v472, 0
        %501 = vmatpush.msra.mxu0 0.0
        %502 = vmatpush.msra.mxu0 0.0
        %503 = vmatpush.msra.mxu0 0.0
        %504 = vmatpush.msra.mxu0 0.0
        %505 = vmatpush.msra.mxu0 0.0
        %506 = vmatpush.msra.mxu0 0.0
        %507 = vmatpush.msra.mxu0 0.0
        %508 = vmatpush.msra.mxu0 0.0
        %509 = vmatpush.msra.mxu0 0.0
        %510 = vmatpush.msra.mxu0 0.0
        %511 = vmatpush.msra.mxu0 0.0
        %512 = vmatpush.msra.mxu0 0.0
        %513 = vmatpush.msra.mxu0 %v476
        %514 = vmatpush.msra.mxu0 %v475
        %515 = vmatpush.msra.mxu0 %v474
        %516 = vmatpush.msra.mxu0 %v473
        %517 = vmatmul.f32.gmra.mxu0 %v478
        %v518 = vpop.f32.mrf.mxu0
        %v519 = vadd.f32 0.0, %v518
        %520 = vmatmul.f32.gmra.mxu0 %v481
        %v521 = vpop.f32.mrf.mxu0
        %v522 = vadd.f32 0.0, %v521
        %523 = vmatmul.f32.gmra.mxu0 %v484
        %v524 = vpop.f32.mrf.mxu0
        %v525 = vadd.f32 0.0, %v524
        %526 = vmatmul.f32.gmra.mxu0 %v487
        %v527 = vpop.f32.mrf.mxu0
        %v528 = vadd.f32 0.0, %v527
        %529 = vmatmul.f32.gmra.mxu0 %v490
        %v530 = vpop.f32.mrf.mxu0
        %v531 = vadd.f32 0.0, %v530
        %532 = vmatmul.f32.gmra.mxu0 %v493
        %v533 = vpop.f32.mrf.mxu0
        %v534 = vadd.f32 0.0, %v533
        %535 = vmatmul.f32.gmra.mxu0 %v496
        %v536 = vpop.f32.mrf.mxu0
        %v537 = vadd.f32 0.0, %v536
        %538 = vmatmul.f32.gmra.mxu0 %v499
        %v539 = vpop.f32.mrf.mxu0
        %v540 = vadd.f32 0.0, %v539
        %541 = vdwg.mxu0
        %v542 = vmul.f32 %v519, 0.125
        %v543 = vmul.f32 %v522, 0.125
        %v544 = vmul.f32 %v525, 0.125
        %v545 = vmul.f32 %v528, 0.125
        %v546 = vmul.f32 %v531, 0.125
        %v547 = vmul.f32 %v534, 0.125
        %v548 = vmul.f32 %v537, 0.125
        %v549 = vmul.f32 %v540, 0.125
        %v550 = vmul.f32 %v457, %v457
        %v551 = vmul.f32 %v458, %v458
        %v552 = vmul.f32 %v459, %v459
        %v553 = vmul.f32 %v460, %v460
        %v554 = vmul.f32 %v461, %v461
        %v555 = vmul.f32 %v462, %v462
        %v556 = vmul.f32 %v463, %v463
        %v557 = vmul.f32 %v464, %v464
        %v558 = vsub.f32 %v542, %v550
        %v559 = vsub.f32 %v543, %v551
        %v560 = vsub.f32 %v544, %v552
        %v561 = vsub.f32 %v545, %v553
        %v562 = vsub.f32 %v546, %v554
        %v563 = vsub.f32 %v547, %v555
        %v564 = vsub.f32 %v548, %v556
        %v565 = vsub.f32 %v549, %v557
        %v566 = vadd.f32 %v558, 1e-05
        %v567 = vadd.f32 %v559, 1e-05
        %v568 = vadd.f32 %v560, 1e-05
        %v569 = vadd.f32 %v561, 1e-05
        %v570 = vadd.f32 %v562, 1e-05
        %v571 = vadd.f32 %v563, 1e-05
        %v572 = vadd.f32 %v564, 1e-05
        %v573 = vadd.f32 %v565, 1e-05
        %v574 = vrsqrt.pop %v566
        %v575 = vmul.f32 %v574, %v566
        %v576 = vmul.f32 %v575, %v574
        %v577 = vmul.f32 0.5, %v576
        %v578 = vsub.f32 1.5, %v577
        %v579 = vmul.f32 %v574, %v578
        %vm580 = vweird.f32 %v566
        %vm581 = vweird.f32 %v574
        %vm582 = vmor %vm580, %vm581
        %v583 = vsel %vm582, %v574, %v579
        %v584 = vrsqrt.pop %v567
        %v585 = vmul.f32 %v584, %v567
        %v586 = vmul.f32 %v585, %v584
        %v587 = vmul.f32 0.5, %v586
        %v588 = vsub.f32 1.5, %v587
        %v589 = vmul.f32 %v584, %v588
        %vm590 = vweird.f32 %v567
        %vm591 = vweird.f32 %v584
        %vm592 = vmor %vm590, %vm591
        %v593 = vsel %vm592, %v584, %v589
        %v594 = vrsqrt.pop %v568
        %v595 = vmul.f32 %v594, %v568
        %v596 = vmul.f32 %v595, %v594
        %v597 = vmul.f32 0.5, %v596
        %v598 = vsub.f32 1.5, %v597
        %v599 = vmul.f32 %v594, %v598
        %vm600 = vweird.f32 %v568
        %vm601 = vweird.f32 %v594
        %vm602 = vmor %vm600, %vm601
        %v603 = vsel %vm602, %v594, %v599
        %v604 = vrsqrt.pop %v569
        %v605 = vmul.f32 %v604, %v569
        %v606 = vmul.f32 %v605, %v604
        %v607 = vmul.f32 0.5, %v606
        %v608 = vsub.f32 1.5, %v607
        %v609 = vmul.f32 %v604, %v608
        %vm610 = vweird.f32 %v569
        %vm611 = vweird.f32 %v604
        %vm612 = vmor %vm610, %vm611
        %v613 = vsel %vm612, %v604, %v609
        %v614 = vrsqrt.pop %v570
        %v615 = vmul.f32 %v614, %v570
        %v616 = vmul.f32 %v615, %v614
        %v617 = vmul.f32 0.5, %v616
        %v618 = vsub.f32 1.5, %v617
        %v619 = vmul.f32 %v614, %v618
        %vm620 = vweird.f32 %v570
        %vm621 = vweird.f32 %v614
        %vm622 = vmor %vm620, %vm621
        %v623 = vsel %vm622, %v614, %v619
        %v624 = vrsqrt.pop %v571
        %v625 = vmul.f32 %v624, %v571
        %v626 = vmul.f32 %v625, %v624
        %v627 = vmul.f32 0.5, %v626
        %v628 = vsub.f32 1.5, %v627
        %v629 = vmul.f32 %v624, %v628
        %vm630 = vweird.f32 %v571
        %vm631 = vweird.f32 %v624
        %vm632 = vmor %vm630, %vm631
        %v633 = vsel %vm632, %v624, %v629
        %v634 = vrsqrt.pop %v572
        %v635 = vmul.f32 %v634, %v572
        %v636 = vmul.f32 %v635, %v634
        %v637 = vmul.f32 0.5, %v636
        %v638 = vsub.f32 1.5, %v637
        %v639 = vmul.f32 %v634, %v638
        %vm640 = vweird.f32 %v572
        %vm641 = vweird.f32 %v634
        %vm642 = vmor %vm640, %vm641
        %v643 = vsel %vm642, %v634, %v639
        %v644 = vrsqrt.pop %v573
        %v645 = vmul.f32 %v644, %v573
        %v646 = vmul.f32 %v645, %v644
        %v647 = vmul.f32 0.5, %v646
        %v648 = vsub.f32 1.5, %v647
        %v649 = vmul.f32 %v644, %v648
        %vm650 = vweird.f32 %v573
        %vm651 = vweird.f32 %v644
        %vm652 = vmor %vm650, %vm651
        %v653 = vsel %vm652, %v644, %v649
        %v654 = vld [vmem:[%s4] sm:$0xf]
        %vm655 = vcmask 31744
        %v657 = vsel %vm655, %v457, 0
        %v660 = vsel %vm655, %v458, 0
        %v663 = vsel %vm655, %v459, 0
        %v666 = vsel %vm655, %v460, 0
        %v669 = vsel %vm655, %v461, 0
        %v672 = vsel %vm655, %v462, 0
        %v675 = vsel %vm655, %v463, 0
        %v678 = vsel %vm655, %v464, 0
        %vm680 = vcmask 1043456
        %v682 = vsel %vm680, %v654, 0
        %684 = vmatpush.msra.mxu0 0.0
        %685 = vmatpush.msra.mxu0 0.0
        %686 = vmatpush.msra.mxu0 0.0
        %687 = vmatpush.msra.mxu0 0.0
        %688 = vmatpush.msra.mxu0 0.0
        %689 = vmatpush.msra.mxu0 0.0
        %690 = vmatpush.msra.mxu0 0.0
        %691 = vmatpush.msra.mxu0 0.0
        %692 = vmatpush.msra.mxu0 0.0
        %693 = vmatpush.msra.mxu0 0.0
        %694 = vmatpush.msra.mxu0 0.0
        %695 = vmatpush.msra.mxu0 0.0
        %696 = vmatpush.msra.mxu0 0.0
        %697 = vmatpush.msra.mxu0 0.0
        %698 = vmatpush.msra.mxu0 0.0
        %699 = vmatpush.msra.mxu0 %v682
        %700 = vmatmul.f32.gmra.mxu0 %v657
        %v701 = vpop.f32.mrf.mxu0
        %v702 = vadd.f32 0.0, %v701
        %703 = vmatmul.f32.gmra.mxu0 %v660
        %v704 = vpop.f32.mrf.mxu0
        %v705 = vadd.f32 0.0, %v704
        %706 = vmatmul.f32.gmra.mxu0 %v663
        %v707 = vpop.f32.mrf.mxu0
        %v708 = vadd.f32 0.0, %v707
        %709 = vmatmul.f32.gmra.mxu0 %v666
        %v710 = vpop.f32.mrf.mxu0
        %v711 = vadd.f32 0.0, %v710
        %712 = vmatmul.f32.gmra.mxu0 %v669
        %v713 = vpop.f32.mrf.mxu0
        %v714 = vadd.f32 0.0, %v713
        %715 = vmatmul.f32.gmra.mxu0 %v672
        %v716 = vpop.f32.mrf.mxu0
        %v717 = vadd.f32 0.0, %v716
        %718 = vmatmul.f32.gmra.mxu0 %v675
        %v719 = vpop.f32.mrf.mxu0
        %v720 = vadd.f32 0.0, %v719
        %721 = vmatmul.f32.gmra.mxu0 %v678
        %v722 = vpop.f32.mrf.mxu0
        %v723 = vadd.f32 0.0, %v722
        %724 = vdwg.mxu0
        %v726 = vsel %vm655, %v583, 0
        %v729 = vsel %vm655, %v593, 0
        %v732 = vsel %vm655, %v603, 0
        %v735 = vsel %vm655, %v613, 0
        %v738 = vsel %vm655, %v623, 0
        %v741 = vsel %vm655, %v633, 0
        %v744 = vsel %vm655, %v643, 0
        %v747 = vsel %vm655, %v653, 0
        %749 = vmatpush.msra.mxu0 0.0
        %750 = vmatpush.msra.mxu0 0.0
        %751 = vmatpush.msra.mxu0 0.0
        %752 = vmatpush.msra.mxu0 0.0
        %753 = vmatpush.msra.mxu0 0.0
        %754 = vmatpush.msra.mxu0 0.0
        %755 = vmatpush.msra.mxu0 0.0
        %756 = vmatpush.msra.mxu0 0.0
        %757 = vmatpush.msra.mxu0 0.0
        %758 = vmatpush.msra.mxu0 0.0
        %759 = vmatpush.msra.mxu0 0.0
        %760 = vmatpush.msra.mxu0 0.0
        %761 = vmatpush.msra.mxu0 0.0
        %762 = vmatpush.msra.mxu0 0.0
        %763 = vmatpush.msra.mxu0 0.0
        %764 = vmatpush.msra.mxu0 %v682
        %765 = vmatmul.f32.gmra.mxu0 %v726
        %v766 = vpop.f32.mrf.mxu0
        %v767 = vadd.f32 0.0, %v766
        %768 = vmatmul.f32.gmra.mxu0 %v729
        %v769 = vpop.f32.mrf.mxu0
        %v770 = vadd.f32 0.0, %v769
        %771 = vmatmul.f32.gmra.mxu0 %v732
        %v772 = vpop.f32.mrf.mxu0
        %v773 = vadd.f32 0.0, %v772
        %774 = vmatmul.f32.gmra.mxu0 %v735
        %v775 = vpop.f32.mrf.mxu0
        %v776 = vadd.f32 0.0, %v775
        %777 = vmatmul.f32.gmra.mxu0 %v738
        %v778 = vpop.f32.mrf.mxu0
        %v779 = vadd.f32 0.0, %v778
        %780 = vmatmul.f32.gmra.mxu0 %v741
        %v781 = vpop.f32.mrf.mxu0
        %v782 = vadd.f32 0.0, %v781
        %783 = vmatmul.f32.gmra.mxu0 %v744
        %v784 = vpop.f32.mrf.mxu0
        %v785 = vadd.f32 0.0, %v784
        %786 = vmatmul.f32.gmra.mxu0 %v747
        %v787 = vpop.f32.mrf.mxu0
        %v788 = vadd.f32 0.0, %v787
        %789 = vdwg.mxu0
        %v790 = vsub.f32 %v389, %v702
        %v791 = vsub.f32 %v392, %v705
        %v792 = vsub.f32 %v395, %v708
        %v793 = vsub.f32 %v398, %v711
        %v794 = vsub.f32 %v401, %v714
        %v795 = vsub.f32 %v404, %v717
        %v796 = vsub.f32 %v407, %v720
        %v797 = vsub.f32 %v410, %v723
        %v798 = vmul.f32 %v790, %v767
        %v799 = vmul.f32 %v791, %v770
        %v800 = vmul.f32 %v792, %v773
        %v801 = vmul.f32 %v793, %v776
        %v802 = vmul.f32 %v794, %v779
        %v803 = vmul.f32 %v795, %v782
        %v804 = vmul.f32 %v796, %v785
        %v805 = vmul.f32 %v797, %v788
        %v806 = vld [vmem:[%s5] sm:$0x1]
        %v808 = vperm.slane %v806, 0
        %v810 = vmul.f32 %v798, %v808
        %v811 = vmul.f32 %v799, %v808
        %v812 = vmul.f32 %v800, %v808
        %v813 = vmul.f32 %v801, %v808
        %v814 = vmul.f32 %v802, %v808
        %v815 = vmul.f32 %v803, %v808
        %v816 = vmul.f32 %v804, %v808
        %v817 = vmul.f32 %v805, %v808
        %v818 = vld [vmem:[%s6] sm:$0x1]
        %v820 = vperm.slane %v818, 0
        %v822 = vadd.f32 %v810, %v820
        %v823 = vadd.f32 %v811, %v820
        %v824 = vadd.f32 %v812, %v820
        %v825 = vadd.f32 %v813, %v820
        %v826 = vadd.f32 %v814, %v820
        %v827 = vadd.f32 %v815, %v820
        %v828 = vadd.f32 %v816, %v820
        %v829 = vadd.f32 %v817, %v820
        %v838 = vrot.slane %v823, 7
        %vm839 = vcmask 1041409
        %v840 = vsel %vm839, %v838, %v822
        %v841 = vrot.slane %v824, 6
        %vm842 = vcmask 1042434
        %v843 = vsel %vm842, %v841, %v840
        %v844 = vrot.slane %v825, 5
        %vm845 = vcmask 1043459
        %v846 = vsel %vm845, %v844, %v843
        %v847 = vrot.slane %v826, 4
        %vm848 = vcmask 1044484
        %v849 = vsel %vm848, %v847, %v846
        %v850 = vrot.slane %v827, 3
        %vm851 = vcmask 1045509
        %v852 = vsel %vm851, %v850, %v849
        %v853 = vrot.slane %v828, 2
        %vm854 = vcmask 1046534
        %v855 = vsel %vm854, %v853, %v852
        %v856 = vrot.slane %v829, 1
        %vm857 = vcmask 1047559
        %v858 = vsel %vm857, %v856, %v855
        %v860 = vrot.slane %v822, 1
        %v861 = vsel %vm839, %v823, %v860
        %v862 = vrot.slane %v824, 7
        %v863 = vsel %vm842, %v862, %v861
        %v864 = vrot.slane %v825, 6
        %v865 = vsel %vm845, %v864, %v863
        %v866 = vrot.slane %v826, 5
        %v867 = vsel %vm848, %v866, %v865
        %v868 = vrot.slane %v827, 4
        %v869 = vsel %vm851, %v868, %v867
        %v870 = vrot.slane %v828, 3
        %v871 = vsel %vm854, %v870, %v869
        %v872 = vrot.slane %v829, 2
        %v873 = vsel %vm857, %v872, %v871
        %874 = vrot.lane.b32.xlu0 %v873, 32
        %v875 = vpop.permute.xlu0 %874
        %v877 = vrot.slane %v822, 2
        %v878 = vrot.slane %v823, 1
        %v879 = vsel %vm839, %v878, %v877
        %v880 = vsel %vm842, %v824, %v879
        %v881 = vrot.slane %v825, 7
        %v882 = vsel %vm845, %v881, %v880
        %v883 = vrot.slane %v826, 6
        %v884 = vsel %vm848, %v883, %v882
        %v885 = vrot.slane %v827, 5
        %v886 = vsel %vm851, %v885, %v884
        %v887 = vrot.slane %v828, 4
        %v888 = vsel %vm854, %v887, %v886
        %v889 = vrot.slane %v829, 3
        %v890 = vsel %vm857, %v889, %v888
        %891 = vrot.lane.b32.xlu0 %v890, 64
        %v892 = vpop.permute.xlu0 %891
        %v894 = vrot.slane %v822, 3
        %v895 = vrot.slane %v823, 2
        %v896 = vsel %vm839, %v895, %v894
        %v897 = vrot.slane %v824, 1
        %v898 = vsel %vm842, %v897, %v896
        %v899 = vsel %vm845, %v825, %v898
        %v900 = vrot.slane %v826, 7
        %v901 = vsel %vm848, %v900, %v899
        %v902 = vrot.slane %v827, 6
        %v903 = vsel %vm851, %v902, %v901
        %v904 = vrot.slane %v828, 5
        %v905 = vsel %vm854, %v904, %v903
        %v906 = vrot.slane %v829, 4
        %v907 = vsel %vm857, %v906, %v905
        %908 = vrot.lane.b32.xlu0 %v907, 96
        %v909 = vpop.permute.xlu0 %908
        %v911 = vrot.slane %v822, 4
        %v912 = vrot.slane %v823, 3
        %v913 = vsel %vm839, %v912, %v911
        %v914 = vrot.slane %v824, 2
        %v915 = vsel %vm842, %v914, %v913
        %v916 = vrot.slane %v825, 1
        %v917 = vsel %vm845, %v916, %v915
        %v918 = vsel %vm848, %v826, %v917
        %v919 = vrot.slane %v827, 7
        %v920 = vsel %vm851, %v919, %v918
        %v921 = vrot.slane %v828, 6
        %v922 = vsel %vm854, %v921, %v920
        %v923 = vrot.slane %v829, 5
        %v924 = vsel %vm857, %v923, %v922
        %v926 = vrot.slane %v822, 5
        %v927 = vrot.slane %v823, 4
        %v928 = vsel %vm839, %v927, %v926
        %v929 = vrot.slane %v824, 3
        %v930 = vsel %vm842, %v929, %v928
        %v931 = vrot.slane %v825, 2
        %v932 = vsel %vm845, %v931, %v930
        %v933 = vrot.slane %v826, 1
        %v934 = vsel %vm848, %v933, %v932
        %v935 = vsel %vm851, %v827, %v934
        %v936 = vrot.slane %v828, 7
        %v937 = vsel %vm854, %v936, %v935
        %v938 = vrot.slane %v829, 6
        %v939 = vsel %vm857, %v938, %v937
        %940 = vrot.lane.b32.xlu0 %v939, 32
        %v941 = vpop.permute.xlu0 %940
        %v943 = vrot.slane %v822, 6
        %v944 = vrot.slane %v823, 5
        %v945 = vsel %vm839, %v944, %v943
        %v946 = vrot.slane %v824, 4
        %v947 = vsel %vm842, %v946, %v945
        %v948 = vrot.slane %v825, 3
        %v949 = vsel %vm845, %v948, %v947
        %v950 = vrot.slane %v826, 2
        %v951 = vsel %vm848, %v950, %v949
        %v952 = vrot.slane %v827, 1
        %v953 = vsel %vm851, %v952, %v951
        %v954 = vsel %vm854, %v828, %v953
        %v955 = vrot.slane %v829, 7
        %v956 = vsel %vm857, %v955, %v954
        %957 = vrot.lane.b32.xlu0 %v956, 64
        %v958 = vpop.permute.xlu0 %957
        %v960 = vrot.slane %v822, 7
        %v961 = vrot.slane %v823, 6
        %v962 = vsel %vm839, %v961, %v960
        %v963 = vrot.slane %v824, 5
        %v964 = vsel %vm842, %v963, %v962
        %v965 = vrot.slane %v825, 4
        %v966 = vsel %vm845, %v965, %v964
        %v967 = vrot.slane %v826, 3
        %v968 = vsel %vm848, %v967, %v966
        %v969 = vrot.slane %v827, 2
        %v970 = vsel %vm851, %v969, %v968
        %v971 = vrot.slane %v828, 1
        %v972 = vsel %vm854, %v971, %v970
        %v973 = vsel %vm857, %v829, %v972
        %974 = vrot.lane.b32.xlu0 %v973, 96
        %v975 = vpop.permute.xlu0 %974
        %v977 = vsel %vm346, %v858, %v875
        %vm978 = vcmask 523264
        %v979 = vsel %vm978, %v977, %v892
        %vm980 = vcmask 785408
        %v981 = vsel %vm980, %v979, %v909
        %v982 = vsel %vm346, %v924, %v941
        %v983 = vsel %vm978, %v982, %v958
        %v984 = vsel %vm980, %v983, %v975
        %985 = vst [vmem:[%s316] sm:$0xff] %v981
        %986 = vst [vmem:[%s316 + $0x8] sm:$0xff] %v984
        %s987 = sand.u32 %s205, 1
        %s988 = scalar_lea.sflag [#allocation3], %s987
        %s989 = sand.u32 %s205, 1
        %s990 = smul.addr %s989, 16
        %s991 = scalar_lea.vmem [#allocation2], %s990
        // Predicated region
        $region49: #{tpu_custom_call.1} parent=47 // pred_check
          %p992 = pneg %p215
        $region50: #{tpu_custom_call.1} parent=47 // pred_check_branch
          %994 = sbr.rel (%p992) target = $region52
        $region51: #{tpu_custom_call.1} parent=47 // pred_region
          %s995 = smul.u32 2, %s26
          %997 = vsyncadd %s988, 0
          %s998 = smul.addr %s25, 8
          %s999 = sadd.s32 %s995, %s998
          %s1000 = smul.addr %s999, 8
          %s1001 = scalar_lea.hbm %s7, %s1000
          %s1003 = sshll.u32 %s991, 4
          %s1004 = int_to_ptr.vmem [resolvable:$true] %s1003
          %s1005 = sshll.u32 %s1001, 4
          %s1006 = int_to_ptr.hbm [resolvable:$true] %s1005
          %1008 = dma.vmem_to_hbm [thread:$0]  %s1004, 256, %s1006, %s988
        $region52: #{tpu_custom_call.1} parent=47 // pred_fallthru
          _
      $region48: #{tpu_custom_call.1} parent=5 // pred_fallthru
        _
      %p1009 = scmp.le.s32.totalorder 2, %s16
      // Predicated region
      $region53: #{tpu_custom_call.1} parent=5 // pred_check
        %p1010 = pneg %p1009
      $region54: #{tpu_custom_call.1} parent=5 // pred_check_branch
        %1012 = sbr.rel (%p1010) target = $region56
      $region55: #{tpu_custom_call.1} parent=5 // pred_region
        %s1013 = ssub.s32 %s16, 2
        // Predicated region
        $region57: #{tpu_custom_call.1} parent=55 // pred_check
          %p1014 = pneg %p221
        $region58: #{tpu_custom_call.1} parent=55 // pred_check_branch
          %1016 = sbr.rel (%p1014) target = $region60
        $region59: #{tpu_custom_call.1} parent=55 // pred_region
          %s1017 = sand.u32 %s206, 1
          %s1018 = scalar_lea.sflag [#allocation3], %s1017
          %s1019 = sand.u32 %s206, 1
          %s1020 = smul.addr %s1019, 16
          %s1021 = scalar_lea.vmem [#allocation2], %s1020
          %1023 = dma.done %s1018, 256
        $region60: #{tpu_custom_call.1} parent=55 // pred_fallthru
          _
      $region56: #{tpu_custom_call.1} parent=5 // pred_fallthru
        _
    $region6: #{tpu_custom_call.1} parent=1 // loop_footer
      %s20 = sadd.s32 1, %s16
    $region7: #{tpu_custom_call.1} parent=1 // loop_footer_branch
      %15 = sbr.rel target = $region3
    $region8: #{tpu_custom_call.1} parent=1 // loop_exit
      _
    %1024 = vsyncpa [#allocation3], 1
    %s1025 = scalar_lea.sflag [#allocation3], 1
    %1026 = vsyncpa %s1025, 1

</llo_original>
